<compile_context>
chip_gen: v7x
topology: tpu7x:2x2x1
jax: 0.10.0
libtpu: 0.0.40
codegen_flags: <defaults>
</compile_context>

<pallas_src>
import jax
import jax.numpy as jnp
from jax.experimental import pallas as pl
from jax.experimental.pallas import tpu as pltpu


# ---------------------------------------------------------------------------
# Pallas kernel: one (TM, TN) tile of the RBF gram matrix.
# ---------------------------------------------------------------------------
def _rbf_gram_kernel(var2_ref, a_ref, b_ref, o_ref):
    # var2_ref: SMEM f32[1]        variance**2 (pre-squared in wrapper)
    # a_ref:    VMEM f32[TM, D+2]  augmented X1 tile:  [-2*x1*inv_ls2 | n1 | 1]
    # b_ref:    VMEM f32[D+2, TN]  augmented X2^T tile: [x2^T ; 1 ; n2]
    # o_ref:    VMEM    [TM, TN]   output gram tile (f32 or bf16)
    #
    # Single MXU contraction yields the full scaled squared distance:
    #   sqdist[i,j] = n1[i] + n2[j] - 2 * sum_d x1[i,d]*x2[j,d]/ls_d^2
    sqdist = jnp.dot(a_ref[...], b_ref[...],
                     preferred_element_type=jnp.float32,
                     precision=jax.lax.Precision.HIGHEST)
    # Guard against catastrophic cancellation making sqdist slightly negative.
    sqdist = jnp.maximum(sqdist, 0.0)
    # Single EUP exp per element; scale by variance^2; cast at the store.
    o_ref[...] = (var2_ref[0] * jnp.exp(-0.5 * sqdist)).astype(o_ref.dtype)


def _round_up(v, m):
    return ((v + m - 1) // m) * m


def rbf_gram(x1, x2, lengthscales, variance, *, tm=512, tn=1024,
             out_dtype=jnp.float32):
    """Tiled Pallas RBF gram: K[i,j] = var^2 * exp(-0.5 * sum_d ((x1-x2)/ls_d)^2).

    Output is exactly (N1, N2) in `out_dtype` (no padded writeback, no slice).
    """
    N1, D = x1.shape
    N2 = x2.shape[0]

    x1f = x1.astype(jnp.float32)
    x2f = x2.astype(jnp.float32)
    inv_ls2 = 1.0 / jnp.square(lengthscales.astype(jnp.float32))       # (D,)

    # Augmented quadratic-form operands (tiny: O(N*D) bytes).
    x1s = x1f * inv_ls2[None, :]                                       # (N1, D)
    n1 = jnp.sum(x1f * x1s, axis=1, keepdims=True)                     # (N1, 1)
    n2 = jnp.sum(jnp.square(x2f) * inv_ls2[None, :], axis=1)           # (N2,)
    A = jnp.concatenate(
        [-2.0 * x1s, n1, jnp.ones((N1, 1), jnp.float32)], axis=1)      # (N1, D+2)
    B = jnp.concatenate(
        [x2f.T, jnp.ones((1, N2), jnp.float32), n2[None, :]], axis=0)  # (D+2, N2)
    Ka = D + 2

    # Tile sizes: TM multiple of 8 (sublanes), TN multiple of 128 (lane-dense
    # stores). Clamp to (rounded-up) problem size for tiny inputs.
    TM = min(tm, _round_up(N1, 8))
    TN = min(tn, _round_up(N2, 128))
    gm = pl.cdiv(N1, TM)
    gn = pl.cdiv(N2, TN)

    # Zero-pad only the small INPUT operands up to the grid extent so ragged
    # edge tiles compute finite, deterministic values (the big output stays
    # unpadded; Pallas masks the out-of-bounds part of edge-tile stores).
    if gm * TM != N1:
        A = jnp.zeros((gm * TM, Ka), jnp.float32).at[:N1, :].set(A)
    if gn * TN != N2:
        B = jnp.zeros((Ka, gn * TN), jnp.float32).at[:, :N2].set(B)

    var2 = jnp.reshape(variance * variance, (1,)).astype(jnp.float32)

    out = pl.pallas_call(
        _rbf_gram_kernel,
        out_shape=jax.ShapeDtypeStruct((N1, N2), out_dtype),
        grid=(gm, gn),
        in_specs=[
            pl.BlockSpec(memory_space=pltpu.MemorySpace.SMEM),   # variance^2 (1,)
            pl.BlockSpec((TM, Ka), lambda i, j: (i, 0)),         # A row tile
            pl.BlockSpec((Ka, TN), lambda i, j: (0, j)),         # B column tile
        ],
        out_specs=pl.BlockSpec((TM, TN), lambda i, j: (i, j)),
        compiler_params=pltpu.CompilerParams(
            dimension_semantics=("parallel", "parallel"),
            vmem_limit_bytes=32 * 1024 * 1024),
    )(var2, A, B)
    return out


# ---------------------------------------------------------------------------
# Plain-JAX glue: MLP parameter heads (SEKernelOnlyLengthscale / ConstantKernel).
# Dropout is identity in eval mode.
# TODO(synk): only STANDARD eval mode implemented (DEBUG / WARM_START /
#             VALUE_LIST parameter paths are pure scalar bookkeeping).
# ---------------------------------------------------------------------------
def init_mlp(key, in_dim, hidden_dims, out_dim):
    dims = [in_dim] + list(hidden_dims) + [out_dim]
    params = []
    for i in range(len(dims) - 1):
        key, kw, kb = jax.random.split(key, 3)
        W = 0.1 * jax.random.normal(kw, (dims[i], dims[i + 1]), jnp.float32)
        b = 0.1 * jax.random.normal(kb, (dims[i + 1],), jnp.float32)
        params.append((W, b))
    return params


def mlp_apply(params, x):
    h = x
    for (W, b) in params[:-1]:
        h = jax.nn.relu(h @ W + b)
    W, b = params[-1]
    return h @ W + b


def rbf_kernel_wrapper_forward(x1, x2, kernel_embeddings, se_mlp_params,
                               const_mlp_params, *, tm=512, tn=1024,
                               out_dtype=jnp.float32):
    """Mirrors RBFKernelWrapper.forward (STANDARD eval mode, untransformed_params=None)."""
    # Per-dim lengthscale = softplus(MLP_se(embedding_d))[0]; one batched MLP
    # call over the (D, emb) stack instead of D tiny dispatches.
    emb = kernel_embeddings[:, 0, :]                               # (D, d_k)
    lengthscales = jax.nn.softplus(mlp_apply(se_mlp_params, emb))[:, 0]   # (D,)

    # Global embedding = mean over dims; variance = softplus(MLP_const(...))[0]
    global_emb = jnp.mean(emb, axis=0)
    variance = jax.nn.softplus(mlp_apply(const_mlp_params, global_emb))[0]

    return rbf_gram(x1, x2, lengthscales, variance,
                    tm=tm, tn=tn, out_dtype=out_dtype)


# ---------------------------------------------------------------------------
# Pure-JAX reference (mirrors the torch module: prod of per-dim SE grams).
# ---------------------------------------------------------------------------
def _reference_gram(x1, x2, lengthscales, variance):
    grams = []
    for d in range(x1.shape[1]):
        a = x1[:, d:d + 1] / lengthscales[d]
        b = x2[:, d:d + 1] / lengthscales[d]
        sq = (a - b.T) ** 2
        grams.append(jnp.exp(-0.5 * sq))
    return (variance ** 2) * jnp.prod(jnp.stack(grams), axis=0)


def _check_case(key, N1, N2, D, kernel_embedding_dim, dim_hidden_layer_list,
                *, tm=512, tn=1024, out_dtype=jnp.float32, atol=1e-4, rtol=1e-4):
    k_x1, k_x2, k_emb, k_se, k_const = jax.random.split(key, 5)
    X1 = jax.random.normal(k_x1, (N1, D), jnp.float32)
    X2 = jax.random.normal(k_x2, (N2, D), jnp.float32)
    kernel_embeddings = jax.random.normal(
        k_emb, (D, 1, kernel_embedding_dim), jnp.float32)

    se_mlp_params = init_mlp(k_se, kernel_embedding_dim, dim_hidden_layer_list, 1)
    const_mlp_params = init_mlp(k_const, kernel_embedding_dim, dim_hidden_layer_list, 1)

    K = rbf_kernel_wrapper_forward(X1, X2, kernel_embeddings, se_mlp_params,
                                   const_mlp_params, tm=tm, tn=tn,
                                   out_dtype=out_dtype)
    K = jax.block_until_ready(K)

    ls_ref = jax.nn.softplus(
        mlp_apply(se_mlp_params, kernel_embeddings[:, 0, :]))[:, 0]
    var_ref = jax.nn.softplus(
        mlp_apply(const_mlp_params, jnp.mean(kernel_embeddings[:, 0, :], axis=0)))[0]
    K_ref = _reference_gram(X1, X2, ls_ref, var_ref)

    assert K.shape == (N1, N2)
    assert K.dtype == out_dtype
    assert jnp.allclose(K.astype(jnp.float32), K_ref, atol=atol, rtol=rtol), \
        "Pallas kernel mismatch vs reference"


if __name__ == "__main__":
    key = jax.random.PRNGKey(0)
    k1, k2, k3 = jax.random.split(key, 3)

    # Small shapes consistent with the module's forward signature.
    _check_case(k1, N1=16, N2=16, D=3, kernel_embedding_dim=32,
                dim_hidden_layer_list=[32, 32])
    # Ragged edges on both axes + a multi-tile 2-D grid (forced small tiles)
    # to exercise the masked edge-tile stores that replaced the slice copy.
    _check_case(k2, N1=72, N2=300, D=5, kernel_embedding_dim=32,
                dim_hidden_layer_list=[32, 32], tm=16, tn=128)
    # Opt-in bf16 output path (f32 compute, cast at store), loose tolerance.
    _check_case(k3, N1=48, N2=160, D=4, kernel_embedding_dim=32,
                dim_hidden_layer_list=[32, 32], out_dtype=jnp.bfloat16,
                atol=5e-2, rtol=5e-2)

    print("KERNEL_OK")
</pallas_src>

<mosaic_0001>
module attributes {stable_mosaic.version = 11 : i64} {
  func.func @_rbf_gram_kernel(%arg0: i32, %arg1: i32, %arg2: memref<1xf32, #tpu.memory_space<smem>>, %arg3: memref<16x5xf32, #tpu.memory_space<vmem>>, %arg4: memref<5x128xf32, #tpu.memory_space<vmem>>, %arg5: memref<16x128xf32, #tpu.memory_space<vmem>>) attributes {dimension_semantics = [#tpu.dimension_semantics<parallel>, #tpu.dimension_semantics<parallel>], iteration_bounds = array<i64: 1, 1>, scalar_prefetch = 0 : i64, scratch_operands = 0 : i64, tpu.core_type = #tpu.core_type<tc>, window_params = [{transform_indices = @transform_0, window_bounds = array<i64: 1>}, {transform_indices = @transform_1, window_bounds = array<i64: 16, 5>}, {transform_indices = @transform_2, window_bounds = array<i64: 5, 128>}, {transform_indices = @transform_3, window_bounds = array<i64: 16, 128>}]} {
    %c0 = arith.constant 0 : index
    %c0_0 = arith.constant 0 : index
    %0 = vector.load %arg3[%c0, %c0_0] : memref<16x5xf32, #tpu.memory_space<vmem>>, vector<16x5xf32>
    %c0_1 = arith.constant 0 : index
    %c0_2 = arith.constant 0 : index
    %1 = vector.load %arg4[%c0_1, %c0_2] : memref<5x128xf32, #tpu.memory_space<vmem>>, vector<5x128xf32>
    %cst = arith.constant dense<0.000000e+00> : vector<16x128xf32>
    %2 = tpu.matmul %0, %1, %cst {dimension_numbers = #tpu.dot_dimension_numbers<[1], [0], [0], [1], [0, 0, 1, 1], [], []>, precision = #tpu.contract_precision<fp32>} : vector<16x5xf32>, vector<5x128xf32>, vector<16x128xf32> -> vector<16x128xf32>
    %cst_3 = arith.constant 0.000000e+00 : f32
    %3 = vector.broadcast %cst_3 : f32 to vector<16x128xf32>
    %4 = arith.maximumf %2, %3 : vector<16x128xf32>
    %c0_4 = arith.constant 0 : index
    %5 = memref.load %arg2[%c0_4] : memref<1xf32, #tpu.memory_space<smem>>
    %cst_5 = arith.constant -5.000000e-01 : f32
    %6 = vector.broadcast %cst_5 : f32 to vector<16x128xf32>
    %7 = arith.mulf %6, %4 : vector<16x128xf32>
    %8 = math.exp %7 : vector<16x128xf32>
    %9 = vector.broadcast %5 : f32 to vector<16x128xf32>
    %10 = arith.mulf %9, %8 : vector<16x128xf32>
    %c0_6 = arith.constant 0 : index
    %c0_7 = arith.constant 0 : index
    %11 = vector.load %arg5[%c0_6, %c0_7] : memref<16x128xf32, #tpu.memory_space<vmem>>, vector<16x128xf32>
    tpu.vector_store %arg5[%c0_6, %c0_7], %10 {strides = array<i32>} : memref<16x128xf32, #tpu.memory_space<vmem>>, vector<16x128xf32>,
    return
  }
  func.func @transform_0(%arg0: i32, %arg1: i32) -> i32 {
    %c0_i32 = arith.constant 0 : i32
    %c0_i32_0 = arith.constant 0 : i32
    return %c0_i32 : i32
  }
  func.func @transform_1(%arg0: i32, %arg1: i32) -> (i32, i32) {
    %c0_i32 = arith.constant 0 : i32
    %c0_i32_0 = arith.constant 0 : i32
    return %arg0, %c0_i32 : i32, i32
  }
  func.func @transform_2(%arg0: i32, %arg1: i32) -> (i32, i32) {
    %c0_i32 = arith.constant 0 : i32
    %c0_i32_0 = arith.constant 0 : i32
    return %c0_i32, %arg1 : i32, i32
  }
  func.func @transform_3(%arg0: i32, %arg1: i32) -> (i32, i32) {
    %c0_i32 = arith.constant 0 : i32
    return %arg0, %arg1 : i32, i32
  }
}

</mosaic_0001>

<llo_original>
// kernel: tpu_custom_call.1
$region0: #{tpu_custom_call.1}
  #allocation0 [shape = 'u32[]', space=smem, size = 0x4, offset = 0x4, fixed_abs, tag = 'smem constant byte address 0x4 - core index']
  #allocation1 [shape = 'u32[144,128]{1,0:T(1,128)}', space=vmem, size = 0x12000, scoped, tag = 'internal scratch']
  #allocation2 [shape = 'f32[1]{0:T(128)S(6)}', space=smem, size = 0x200, scoped, tag = 'scoped memory for tpu_custom_call.1']
  %s0 = inlined_call_operand.<no memory space> [shape: f32[1], index: 0, kind: input, shape index: {}]
  %s1 = inlined_call_operand.vmem [shape: f32[16,5], index: 1, kind: input, shape index: {}]
  %s2 = inlined_call_operand.vmem [shape: f32[5,128], index: 2, kind: input, shape index: {}]
  %s3 = inlined_call_operand.hbm [shape: f32[16,16], index: 3, kind: output, shape index: {}]
  %s4 = sld [smem:[#allocation0]]
  $region22: #{tpu_custom_call.1} parent=0
    _
  %s6 = ssub.s32 1, %s4
  %s7 = scalar_select 0, %s6, %s4
  %8 = sst [smem:[#allocation2]] %s0
  $region1: #{tpu_custom_call.1} parent=0
    #allocation3 [shape = 'u8[8192]{0}', space=vmem, size = 0x2000, scoped, tag = 'output window, operand 0, single buffered']
    #allocation4 [shape = 's32[1]{0}', space=sflag, size = 0x4, scoped, tag = 'scoped memory for tpu_custom_call.1']
    %9 = vsyncpa [#allocation4], 0
    // Predicated region
    $region2: #{tpu_custom_call.1} parent=1 // pred_check
      _
    $region3: #{tpu_custom_call.1} parent=1 // pred_check_branch
      %11 = sbr.rel (0) target = $region5
    $region4: #{tpu_custom_call.1} parent=1 // pred_region
      _
    $region5: #{tpu_custom_call.1} parent=1 // pred_fallthru
      _
    // Predicated region
    $region6: #{tpu_custom_call.1} parent=1 // pred_check
      _
    $region7: #{tpu_custom_call.1} parent=1 // pred_check_branch
      %13 = sbr.rel (0) target = $region9
    $region8: #{tpu_custom_call.1} parent=1 // pred_region
      _
    $region9: #{tpu_custom_call.1} parent=1 // pred_fallthru
      _
    // Predicated region
    $region10: #{tpu_custom_call.1} parent=1 // pred_check
      _
    $region11: #{tpu_custom_call.1} parent=1 // pred_check_branch
      %15 = sbr.rel (0) target = $region13
    $region12: #{tpu_custom_call.1} parent=1 // pred_region
      _
    $region13: #{tpu_custom_call.1} parent=1 // pred_fallthru
      _
    %v16 = vld [vmem:[%s1] sm:$0xff]
    %v17 = vld [vmem:[%s1 + $0x8] sm:$0xff]
    %v18 = vld [vmem:[%s2] sm:$0x1f]
    %vm19 = vcmask 39936
    %v21 = vsel %vm19, %v16, 0
    %v24 = vsel %vm19, %v17, 0
    %vm26 = vcmask 1044480
    %v28 = vsel %vm26, %v18, 0
    %30 = vmatprep.subr.mxu0 0.0
    %v31 = vand.u32 %v28, 4294901760
    %32 = vmatpush1.msra.mxu0 %v31
    %33 = vmatprep.subr.mxu0 0.0
    %34 = vmatpush1.msra.mxu0 0.0
    %35 = vmatprep.subr.mxu0 0.0
    %36 = vmatpush1.msra.mxu0 0.0
    %37 = vmatprep.subr.mxu0 0.0
    %38 = vmatpush1.msra.mxu0 0.0
    %39 = vmatprep.subr.mxu0 0.0
    %40 = vmatpush1.msra.mxu0 0.0
    %41 = vmatprep.subr.mxu0 0.0
    %42 = vmatpush1.msra.mxu0 0.0
    %43 = vmatprep.subr.mxu0 0.0
    %44 = vmatpush1.msra.mxu0 0.0
    %45 = vmatprep.subr.mxu0 0.0
    %46 = vmatpush1.msra.mxu0 0.0
    %47 = vmatprep.subr.mxu0 0.0
    %48 = vmatpush1.msra.mxu0 0.0
    %49 = vmatprep.subr.mxu0 0.0
    %50 = vmatpush1.msra.mxu0 0.0
    %51 = vmatprep.subr.mxu0 0.0
    %52 = vmatpush1.msra.mxu0 0.0
    %53 = vmatprep.subr.mxu0 0.0
    %54 = vmatpush1.msra.mxu0 0.0
    %55 = vmatprep.subr.mxu0 0.0
    %56 = vmatpush1.msra.mxu0 0.0
    %57 = vmatprep.subr.mxu0 0.0
    %58 = vmatpush1.msra.mxu0 0.0
    %59 = vmatprep.subr.mxu0 0.0
    %60 = vmatpush1.msra.mxu0 0.0
    %61 = vmatprep.subr.mxu0 0.0
    %62 = vmatpush1.msra.mxu0 0.0
    %63 = vmatprep.subr.mxu0 0.0
    %64 = vmatpush1.msra.mxu0 0.0
    %65 = vmatprep.subr.mxu0 0.0
    %66 = vmatpush1.msra.mxu0 0.0
    %67 = vmatprep.subr.mxu0 0.0
    %68 = vmatpush1.msra.mxu0 0.0
    %69 = vmatprep.subr.mxu0 0.0
    %70 = vmatpush1.msra.mxu0 0.0
    %71 = vmatprep.subr.mxu0 0.0
    %72 = vmatpush1.msra.mxu0 0.0
    %73 = vmatprep.subr.mxu0 0.0
    %74 = vmatpush1.msra.mxu0 0.0
    %75 = vmatprep.subr.mxu0 0.0
    %76 = vmatpush1.msra.mxu0 0.0
    %77 = vmatprep.subr.mxu0 0.0
    %78 = vmatpush1.msra.mxu0 0.0
    %79 = vmatprep.subr.mxu0 0.0
    %80 = vmatpush1.msra.mxu0 0.0
    %81 = vmatprep.subr.mxu0 0.0
    %82 = vmatpush1.msra.mxu0 0.0
    %83 = vmatprep.subr.mxu0 0.0
    %84 = vmatpush1.msra.mxu0 0.0
    %85 = vmatprep.subr.mxu0 0.0
    %86 = vmatpush1.msra.mxu0 0.0
    %87 = vmatprep.subr.mxu0 0.0
    %88 = vmatpush1.msra.mxu0 0.0
    %89 = vmatprep.subr.mxu0 0.0
    %90 = vmatpush1.msra.mxu0 0.0
    %91 = vmatprep.subr.mxu0 0.0
    %92 = vmatpush1.msra.mxu0 0.0
    %93 = vmatprep.subr.mxu0 0.0
    %94 = vmatpush1.msra.mxu0 0.0
    %95 = vmatprep.mubr.f32.mxu0 0.0
    %v96 = vand.u32 %v21, 4294901760
    %v97 = vsub.f32 %v21, %v96
    %v98 = vand.u32 %v97, 4294901760
    %v99 = vsub.f32 %v97, %v98
    %v100 = vand.u32 %v99, 4294901760
    %101 = vmatmul.mubr.f32.gmra.mrb[0].mxu0 %v100
    %v102 = vpop.f32.mrb[0].mxu0
    %v103 = vadd.f32 0.0, %v102
    %v104 = vpop.f32.mrb[0].mxu0
    %105 = vmatprep.mubr.f32.mxu0 0.0
    %v106 = vand.u32 %v24, 4294901760
    %v107 = vsub.f32 %v24, %v106
    %v108 = vand.u32 %v107, 4294901760
    %v109 = vsub.f32 %v107, %v108
    %v110 = vand.u32 %v109, 4294901760
    %111 = vmatmul.mubr.f32.gmra.mrb[0].mxu0 %v110
    %v112 = vpop.f32.mrb[0].mxu0
    %v113 = vadd.f32 0.0, %v112
    %v114 = vpop.f32.mrb[0].mxu0
    %115 = vdwg.mxu0
    %116 = vmatprep.subr.mxu0 0.0
    %v117 = vand.u32 %v28, 4294901760
    %v118 = vsub.f32 %v28, %v117
    %v119 = vand.u32 %v118, 4294901760
    %v120 = vsub.f32 %v118, %v119
    %v121 = vand.u32 %v120, 4294901760
    %122 = vmatpush1.msra.mxu0 %v121
    %123 = vmatprep.subr.mxu0 0.0
    %124 = vmatpush1.msra.mxu0 0.0
    %125 = vmatprep.subr.mxu0 0.0
    %126 = vmatpush1.msra.mxu0 0.0
    %127 = vmatprep.subr.mxu0 0.0
    %128 = vmatpush1.msra.mxu0 0.0
    %129 = vmatprep.subr.mxu0 0.0
    %130 = vmatpush1.msra.mxu0 0.0
    %131 = vmatprep.subr.mxu0 0.0
    %132 = vmatpush1.msra.mxu0 0.0
    %133 = vmatprep.subr.mxu0 0.0
    %134 = vmatpush1.msra.mxu0 0.0
    %135 = vmatprep.subr.mxu0 0.0
    %136 = vmatpush1.msra.mxu0 0.0
    %137 = vmatprep.subr.mxu0 0.0
    %138 = vmatpush1.msra.mxu0 0.0
    %139 = vmatprep.subr.mxu0 0.0
    %140 = vmatpush1.msra.mxu0 0.0
    %141 = vmatprep.subr.mxu0 0.0
    %142 = vmatpush1.msra.mxu0 0.0
    %143 = vmatprep.subr.mxu0 0.0
    %144 = vmatpush1.msra.mxu0 0.0
    %145 = vmatprep.subr.mxu0 0.0
    %146 = vmatpush1.msra.mxu0 0.0
    %147 = vmatprep.subr.mxu0 0.0
    %148 = vmatpush1.msra.mxu0 0.0
    %149 = vmatprep.subr.mxu0 0.0
    %150 = vmatpush1.msra.mxu0 0.0
    %151 = vmatprep.subr.mxu0 0.0
    %152 = vmatpush1.msra.mxu0 0.0
    %153 = vmatprep.subr.mxu0 0.0
    %154 = vmatpush1.msra.mxu0 0.0
    %155 = vmatprep.subr.mxu0 0.0
    %156 = vmatpush1.msra.mxu0 0.0
    %157 = vmatprep.subr.mxu0 0.0
    %158 = vmatpush1.msra.mxu0 0.0
    %159 = vmatprep.subr.mxu0 0.0
    %160 = vmatpush1.msra.mxu0 0.0
    %161 = vmatprep.subr.mxu0 0.0
    %162 = vmatpush1.msra.mxu0 0.0
    %163 = vmatprep.subr.mxu0 0.0
    %164 = vmatpush1.msra.mxu0 0.0
    %165 = vmatprep.subr.mxu0 0.0
    %166 = vmatpush1.msra.mxu0 0.0
    %167 = vmatprep.subr.mxu0 0.0
    %168 = vmatpush1.msra.mxu0 0.0
    %169 = vmatprep.subr.mxu0 0.0
    %170 = vmatpush1.msra.mxu0 0.0
    %171 = vmatprep.subr.mxu0 0.0
    %172 = vmatpush1.msra.mxu0 0.0
    %173 = vmatprep.subr.mxu0 0.0
    %174 = vmatpush1.msra.mxu0 0.0
    %175 = vmatprep.subr.mxu0 0.0
    %176 = vmatpush1.msra.mxu0 0.0
    %177 = vmatprep.subr.mxu0 0.0
    %178 = vmatpush1.msra.mxu0 0.0
    %179 = vmatprep.subr.mxu0 0.0
    %180 = vmatpush1.msra.mxu0 0.0
    %181 = vmatprep.subr.mxu0 0.0
    %182 = vmatpush1.msra.mxu0 0.0
    %183 = vmatprep.subr.mxu0 0.0
    %184 = vmatpush1.msra.mxu0 0.0
    %185 = vmatprep.mubr.f32.mxu0 0.0
    %v186 = vand.u32 %v21, 4294901760
    %187 = vmatmul.mubr.f32.gmra.mrb[0].mxu0 %v186
    %v188 = vpop.f32.mrb[0].mxu0
    %v189 = vadd.f32 %v103, %v188
    %v190 = vpop.f32.mrb[0].mxu0
    %191 = vmatprep.mubr.f32.mxu0 0.0
    %v192 = vand.u32 %v24, 4294901760
    %193 = vmatmul.mubr.f32.gmra.mrb[0].mxu0 %v192
    %v194 = vpop.f32.mrb[0].mxu0
    %v195 = vadd.f32 %v113, %v194
    %v196 = vpop.f32.mrb[0].mxu0
    %197 = vdwg.mxu0
    %198 = vmatprep.subr.mxu0 0.0
    %v199 = vand.u32 %v28, 4294901760
    %v200 = vsub.f32 %v28, %v199
    %201 = vmatpush1.msra.mxu0 %v200
    %202 = vmatprep.subr.mxu0 0.0
    %203 = vmatpush1.msra.mxu0 0.0
    %204 = vmatprep.subr.mxu0 0.0
    %205 = vmatpush1.msra.mxu0 0.0
    %206 = vmatprep.subr.mxu0 0.0
    %207 = vmatpush1.msra.mxu0 0.0
    %208 = vmatprep.subr.mxu0 0.0
    %209 = vmatpush1.msra.mxu0 0.0
    %210 = vmatprep.subr.mxu0 0.0
    %211 = vmatpush1.msra.mxu0 0.0
    %212 = vmatprep.subr.mxu0 0.0
    %213 = vmatpush1.msra.mxu0 0.0
    %214 = vmatprep.subr.mxu0 0.0
    %215 = vmatpush1.msra.mxu0 0.0
    %216 = vmatprep.subr.mxu0 0.0
    %217 = vmatpush1.msra.mxu0 0.0
    %218 = vmatprep.subr.mxu0 0.0
    %219 = vmatpush1.msra.mxu0 0.0
    %220 = vmatprep.subr.mxu0 0.0
    %221 = vmatpush1.msra.mxu0 0.0
    %222 = vmatprep.subr.mxu0 0.0
    %223 = vmatpush1.msra.mxu0 0.0
    %224 = vmatprep.subr.mxu0 0.0
    %225 = vmatpush1.msra.mxu0 0.0
    %226 = vmatprep.subr.mxu0 0.0
    %227 = vmatpush1.msra.mxu0 0.0
    %228 = vmatprep.subr.mxu0 0.0
    %229 = vmatpush1.msra.mxu0 0.0
    %230 = vmatprep.subr.mxu0 0.0
    %231 = vmatpush1.msra.mxu0 0.0
    %232 = vmatprep.subr.mxu0 0.0
    %233 = vmatpush1.msra.mxu0 0.0
    %234 = vmatprep.subr.mxu0 0.0
    %235 = vmatpush1.msra.mxu0 0.0
    %236 = vmatprep.subr.mxu0 0.0
    %237 = vmatpush1.msra.mxu0 0.0
    %238 = vmatprep.subr.mxu0 0.0
    %239 = vmatpush1.msra.mxu0 0.0
    %240 = vmatprep.subr.mxu0 0.0
    %241 = vmatpush1.msra.mxu0 0.0
    %242 = vmatprep.subr.mxu0 0.0
    %243 = vmatpush1.msra.mxu0 0.0
    %244 = vmatprep.subr.mxu0 0.0
    %245 = vmatpush1.msra.mxu0 0.0
    %246 = vmatprep.subr.mxu0 0.0
    %247 = vmatpush1.msra.mxu0 0.0
    %248 = vmatprep.subr.mxu0 0.0
    %249 = vmatpush1.msra.mxu0 0.0
    %250 = vmatprep.subr.mxu0 0.0
    %251 = vmatpush1.msra.mxu0 0.0
    %252 = vmatprep.subr.mxu0 0.0
    %253 = vmatpush1.msra.mxu0 0.0
    %254 = vmatprep.subr.mxu0 0.0
    %255 = vmatpush1.msra.mxu0 0.0
    %256 = vmatprep.subr.mxu0 0.0
    %257 = vmatpush1.msra.mxu0 0.0
    %258 = vmatprep.subr.mxu0 0.0
    %259 = vmatpush1.msra.mxu0 0.0
    %260 = vmatprep.subr.mxu0 0.0
    %261 = vmatpush1.msra.mxu0 0.0
    %262 = vmatprep.subr.mxu0 0.0
    %263 = vmatpush1.msra.mxu0 0.0
    %264 = vmatprep.mubr.f32.mxu0 0.0
    %v265 = vand.u32 %v21, 4294901760
    %v266 = vsub.f32 %v21, %v265
    %267 = vmatmul.mubr.f32.gmra.mrb[0].mxu0 %v266
    %v268 = vpop.f32.mrb[0].mxu0
    %v269 = vadd.f32 %v189, %v268
    %v270 = vpop.f32.mrb[0].mxu0
    %271 = vmatprep.mubr.f32.mxu0 0.0
    %v272 = vand.u32 %v24, 4294901760
    %v273 = vsub.f32 %v24, %v272
    %274 = vmatmul.mubr.f32.gmra.mrb[0].mxu0 %v273
    %v275 = vpop.f32.mrb[0].mxu0
    %v276 = vadd.f32 %v195, %v275
    %v277 = vpop.f32.mrb[0].mxu0
    %278 = vdwg.mxu0
    %279 = vmatprep.subr.mxu0 0.0
    %v280 = vand.u32 %v28, 4294901760
    %281 = vmatpush1.msra.mxu0 %v280
    %282 = vmatprep.subr.mxu0 0.0
    %283 = vmatpush1.msra.mxu0 0.0
    %284 = vmatprep.subr.mxu0 0.0
    %285 = vmatpush1.msra.mxu0 0.0
    %286 = vmatprep.subr.mxu0 0.0
    %287 = vmatpush1.msra.mxu0 0.0
    %288 = vmatprep.subr.mxu0 0.0
    %289 = vmatpush1.msra.mxu0 0.0
    %290 = vmatprep.subr.mxu0 0.0
    %291 = vmatpush1.msra.mxu0 0.0
    %292 = vmatprep.subr.mxu0 0.0
    %293 = vmatpush1.msra.mxu0 0.0
    %294 = vmatprep.subr.mxu0 0.0
    %295 = vmatpush1.msra.mxu0 0.0
    %296 = vmatprep.subr.mxu0 0.0
    %297 = vmatpush1.msra.mxu0 0.0
    %298 = vmatprep.subr.mxu0 0.0
    %299 = vmatpush1.msra.mxu0 0.0
    %300 = vmatprep.subr.mxu0 0.0
    %301 = vmatpush1.msra.mxu0 0.0
    %302 = vmatprep.subr.mxu0 0.0
    %303 = vmatpush1.msra.mxu0 0.0
    %304 = vmatprep.subr.mxu0 0.0
    %305 = vmatpush1.msra.mxu0 0.0
    %306 = vmatprep.subr.mxu0 0.0
    %307 = vmatpush1.msra.mxu0 0.0
    %308 = vmatprep.subr.mxu0 0.0
    %309 = vmatpush1.msra.mxu0 0.0
    %310 = vmatprep.subr.mxu0 0.0
    %311 = vmatpush1.msra.mxu0 0.0
    %312 = vmatprep.subr.mxu0 0.0
    %313 = vmatpush1.msra.mxu0 0.0
    %314 = vmatprep.subr.mxu0 0.0
    %315 = vmatpush1.msra.mxu0 0.0
    %316 = vmatprep.subr.mxu0 0.0
    %317 = vmatpush1.msra.mxu0 0.0
    %318 = vmatprep.subr.mxu0 0.0
    %319 = vmatpush1.msra.mxu0 0.0
    %320 = vmatprep.subr.mxu0 0.0
    %321 = vmatpush1.msra.mxu0 0.0
    %322 = vmatprep.subr.mxu0 0.0
    %323 = vmatpush1.msra.mxu0 0.0
    %324 = vmatprep.subr.mxu0 0.0
    %325 = vmatpush1.msra.mxu0 0.0
    %326 = vmatprep.subr.mxu0 0.0
    %327 = vmatpush1.msra.mxu0 0.0
    %328 = vmatprep.subr.mxu0 0.0
    %329 = vmatpush1.msra.mxu0 0.0
    %330 = vmatprep.subr.mxu0 0.0
    %331 = vmatpush1.msra.mxu0 0.0
    %332 = vmatprep.subr.mxu0 0.0
    %333 = vmatpush1.msra.mxu0 0.0
    %334 = vmatprep.subr.mxu0 0.0
    %335 = vmatpush1.msra.mxu0 0.0
    %336 = vmatprep.subr.mxu0 0.0
    %337 = vmatpush1.msra.mxu0 0.0
    %338 = vmatprep.subr.mxu0 0.0
    %339 = vmatpush1.msra.mxu0 0.0
    %340 = vmatprep.subr.mxu0 0.0
    %341 = vmatpush1.msra.mxu0 0.0
    %342 = vmatprep.subr.mxu0 0.0
    %343 = vmatpush1.msra.mxu0 0.0
    %344 = vmatprep.mubr.f32.mxu0 0.0
    %v345 = vand.u32 %v21, 4294901760
    %v346 = vsub.f32 %v21, %v345
    %v347 = vand.u32 %v346, 4294901760
    %348 = vmatmul.mubr.f32.gmra.mrb[0].mxu0 %v347
    %v349 = vpop.f32.mrb[0].mxu0
    %v350 = vadd.f32 %v269, %v349
    %v351 = vpop.f32.mrb[0].mxu0
    %352 = vmatprep.mubr.f32.mxu0 0.0
    %v353 = vand.u32 %v24, 4294901760
    %v354 = vsub.f32 %v24, %v353
    %v355 = vand.u32 %v354, 4294901760
    %356 = vmatmul.mubr.f32.gmra.mrb[0].mxu0 %v355
    %v357 = vpop.f32.mrb[0].mxu0
    %v358 = vadd.f32 %v276, %v357
    %v359 = vpop.f32.mrb[0].mxu0
    %360 = vdwg.mxu0
    %361 = vmatprep.subr.mxu0 0.0
    %v362 = vand.u32 %v28, 4294901760
    %v363 = vsub.f32 %v28, %v362
    %v364 = vand.u32 %v363, 4294901760
    %365 = vmatpush1.msra.mxu0 %v364
    %366 = vmatprep.subr.mxu0 0.0
    %367 = vmatpush1.msra.mxu0 0.0
    %368 = vmatprep.subr.mxu0 0.0
    %369 = vmatpush1.msra.mxu0 0.0
    %370 = vmatprep.subr.mxu0 0.0
    %371 = vmatpush1.msra.mxu0 0.0
    %372 = vmatprep.subr.mxu0 0.0
    %373 = vmatpush1.msra.mxu0 0.0
    %374 = vmatprep.subr.mxu0 0.0
    %375 = vmatpush1.msra.mxu0 0.0
    %376 = vmatprep.subr.mxu0 0.0
    %377 = vmatpush1.msra.mxu0 0.0
    %378 = vmatprep.subr.mxu0 0.0
    %379 = vmatpush1.msra.mxu0 0.0
    %380 = vmatprep.subr.mxu0 0.0
    %381 = vmatpush1.msra.mxu0 0.0
    %382 = vmatprep.subr.mxu0 0.0
    %383 = vmatpush1.msra.mxu0 0.0
    %384 = vmatprep.subr.mxu0 0.0
    %385 = vmatpush1.msra.mxu0 0.0
    %386 = vmatprep.subr.mxu0 0.0
    %387 = vmatpush1.msra.mxu0 0.0
    %388 = vmatprep.subr.mxu0 0.0
    %389 = vmatpush1.msra.mxu0 0.0
    %390 = vmatprep.subr.mxu0 0.0
    %391 = vmatpush1.msra.mxu0 0.0
    %392 = vmatprep.subr.mxu0 0.0
    %393 = vmatpush1.msra.mxu0 0.0
    %394 = vmatprep.subr.mxu0 0.0
    %395 = vmatpush1.msra.mxu0 0.0
    %396 = vmatprep.subr.mxu0 0.0
    %397 = vmatpush1.msra.mxu0 0.0
    %398 = vmatprep.subr.mxu0 0.0
    %399 = vmatpush1.msra.mxu0 0.0
    %400 = vmatprep.subr.mxu0 0.0
    %401 = vmatpush1.msra.mxu0 0.0
    %402 = vmatprep.subr.mxu0 0.0
    %403 = vmatpush1.msra.mxu0 0.0
    %404 = vmatprep.subr.mxu0 0.0
    %405 = vmatpush1.msra.mxu0 0.0
    %406 = vmatprep.subr.mxu0 0.0
    %407 = vmatpush1.msra.mxu0 0.0
    %408 = vmatprep.subr.mxu0 0.0
    %409 = vmatpush1.msra.mxu0 0.0
    %410 = vmatprep.subr.mxu0 0.0
    %411 = vmatpush1.msra.mxu0 0.0
    %412 = vmatprep.subr.mxu0 0.0
    %413 = vmatpush1.msra.mxu0 0.0
    %414 = vmatprep.subr.mxu0 0.0
    %415 = vmatpush1.msra.mxu0 0.0
    %416 = vmatprep.subr.mxu0 0.0
    %417 = vmatpush1.msra.mxu0 0.0
    %418 = vmatprep.subr.mxu0 0.0
    %419 = vmatpush1.msra.mxu0 0.0
    %420 = vmatprep.subr.mxu0 0.0
    %421 = vmatpush1.msra.mxu0 0.0
    %422 = vmatprep.subr.mxu0 0.0
    %423 = vmatpush1.msra.mxu0 0.0
    %424 = vmatprep.subr.mxu0 0.0
    %425 = vmatpush1.msra.mxu0 0.0
    %426 = vmatprep.subr.mxu0 0.0
    %427 = vmatpush1.msra.mxu0 0.0
    %428 = vmatprep.mubr.f32.mxu0 0.0
    %v429 = vand.u32 %v21, 4294901760
    %430 = vmatmul.mubr.f32.gmra.mrb[0].mxu0 %v429
    %v431 = vpop.f32.mrb[0].mxu0
    %v432 = vadd.f32 %v350, %v431
    %v433 = vpop.f32.mrb[0].mxu0
    %434 = vmatprep.mubr.f32.mxu0 0.0
    %v435 = vand.u32 %v24, 4294901760
    %436 = vmatmul.mubr.f32.gmra.mrb[0].mxu0 %v435
    %v437 = vpop.f32.mrb[0].mxu0
    %v438 = vadd.f32 %v358, %v437
    %v439 = vpop.f32.mrb[0].mxu0
    %440 = vdwg.mxu0
    %441 = vmatprep.subr.mxu0 0.0
    %v442 = vand.u32 %v28, 4294901760
    %443 = vmatpush1.msra.mxu0 %v442
    %444 = vmatprep.subr.mxu0 0.0
    %445 = vmatpush1.msra.mxu0 0.0
    %446 = vmatprep.subr.mxu0 0.0
    %447 = vmatpush1.msra.mxu0 0.0
    %448 = vmatprep.subr.mxu0 0.0
    %449 = vmatpush1.msra.mxu0 0.0
    %450 = vmatprep.subr.mxu0 0.0
    %451 = vmatpush1.msra.mxu0 0.0
    %452 = vmatprep.subr.mxu0 0.0
    %453 = vmatpush1.msra.mxu0 0.0
    %454 = vmatprep.subr.mxu0 0.0
    %455 = vmatpush1.msra.mxu0 0.0
    %456 = vmatprep.subr.mxu0 0.0
    %457 = vmatpush1.msra.mxu0 0.0
    %458 = vmatprep.subr.mxu0 0.0
    %459 = vmatpush1.msra.mxu0 0.0
    %460 = vmatprep.subr.mxu0 0.0
    %461 = vmatpush1.msra.mxu0 0.0
    %462 = vmatprep.subr.mxu0 0.0
    %463 = vmatpush1.msra.mxu0 0.0
    %464 = vmatprep.subr.mxu0 0.0
    %465 = vmatpush1.msra.mxu0 0.0
    %466 = vmatprep.subr.mxu0 0.0
    %467 = vmatpush1.msra.mxu0 0.0
    %468 = vmatprep.subr.mxu0 0.0
    %469 = vmatpush1.msra.mxu0 0.0
    %470 = vmatprep.subr.mxu0 0.0
    %471 = vmatpush1.msra.mxu0 0.0
    %472 = vmatprep.subr.mxu0 0.0
    %473 = vmatpush1.msra.mxu0 0.0
    %474 = vmatprep.subr.mxu0 0.0
    %475 = vmatpush1.msra.mxu0 0.0
    %476 = vmatprep.subr.mxu0 0.0
    %477 = vmatpush1.msra.mxu0 0.0
    %478 = vmatprep.subr.mxu0 0.0
    %479 = vmatpush1.msra.mxu0 0.0
    %480 = vmatprep.subr.mxu0 0.0
    %481 = vmatpush1.msra.mxu0 0.0
    %482 = vmatprep.subr.mxu0 0.0
    %483 = vmatpush1.msra.mxu0 0.0
    %484 = vmatprep.subr.mxu0 0.0
    %485 = vmatpush1.msra.mxu0 0.0
    %486 = vmatprep.subr.mxu0 0.0
    %487 = vmatpush1.msra.mxu0 0.0
    %488 = vmatprep.subr.mxu0 0.0
    %489 = vmatpush1.msra.mxu0 0.0
    %490 = vmatprep.subr.mxu0 0.0
    %491 = vmatpush1.msra.mxu0 0.0
    %492 = vmatprep.subr.mxu0 0.0
    %493 = vmatpush1.msra.mxu0 0.0
    %494 = vmatprep.subr.mxu0 0.0
    %495 = vmatpush1.msra.mxu0 0.0
    %496 = vmatprep.subr.mxu0 0.0
    %497 = vmatpush1.msra.mxu0 0.0
    %498 = vmatprep.subr.mxu0 0.0
    %499 = vmatpush1.msra.mxu0 0.0
    %500 = vmatprep.subr.mxu0 0.0
    %501 = vmatpush1.msra.mxu0 0.0
    %502 = vmatprep.subr.mxu0 0.0
    %503 = vmatpush1.msra.mxu0 0.0
    %504 = vmatprep.subr.mxu0 0.0
    %505 = vmatpush1.msra.mxu0 0.0
    %506 = vmatprep.mubr.f32.mxu0 0.0
    %v507 = vand.u32 %v21, 4294901760
    %508 = vmatmul.mubr.f32.gmra.mrb[0].mxu0 %v507
    %v509 = vpop.f32.mrb[0].mxu0
    %v510 = vadd.f32 %v432, %v509
    %v511 = vpop.f32.mrb[0].mxu0
    %512 = vmatprep.mubr.f32.mxu0 0.0
    %v513 = vand.u32 %v24, 4294901760
    %514 = vmatmul.mubr.f32.gmra.mrb[0].mxu0 %v513
    %v515 = vpop.f32.mrb[0].mxu0
    %v516 = vadd.f32 %v438, %v515
    %v517 = vpop.f32.mrb[0].mxu0
    %518 = vdwg.mxu0
    %v519 = vmax.f32 %v510, 0.0
    %v520 = vmax.f32 %v516, 0.0
    %s521 = sld [smem:[#allocation2]]
    %v522 = vmul.f32 %v519, -0.5
    %v523 = vmul.f32 %v520, -0.5
    %v524 = vmul.f32 %v522, 1.442695
    %v525 = vpow.pop %v524
    %v526 = vmul.f32 %v523, 1.442695
    %v527 = vpow.pop %v526
    %v528 = vstv %s521
    %v529 = vmul.f32 %v528, %v525
    %v530 = vmul.f32 %v528, %v527
    %531 = vst [vmem:[#allocation3] sm:$0xff] %v529
    %532 = vst [vmem:[#allocation3 + $0x8] sm:$0xff] %v530
    // Predicated region
    $region14: #{tpu_custom_call.1} parent=1 // pred_check
      _
    $region15: #{tpu_custom_call.1} parent=1 // pred_check_branch
      %534 = sbr.rel (0) target = $region17
    $region16: #{tpu_custom_call.1} parent=1 // pred_region
      %s536 = ssub.s32 256, 256
      %537 = vsyncadd [#allocation4], %s536
      %s538 = sshll.u32 [#allocation3], 4
      %s539 = int_to_ptr.vmem [resolvable:$true] %s538
      %544 = dma.vmem_to_hbm [thread:$0]  %s539, 256, %s3, [#allocation4], 128, 128, 8
    $region17: #{tpu_custom_call.1} parent=1 // pred_fallthru
      _
    // Predicated region
    $region18: #{tpu_custom_call.1} parent=1 // pred_check
      _
    $region19: #{tpu_custom_call.1} parent=1 // pred_check_branch
      %546 = sbr.rel (0) target = $region21
    $region20: #{tpu_custom_call.1} parent=1 // pred_region
      %547 = dma.done [#allocation4], 256
    $region21: #{tpu_custom_call.1} parent=1 // pred_fallthru
      _
    %548 = vsyncpa [#allocation4], 1

</llo_original>
